<compile_context>
chip_gen: v5e
topology: v5e:2x2
jax: 0.10.0
libtpu: 0.0.40
codegen_flags: <defaults>
</compile_context>

<pallas_src>
import jax
import jax.numpy as jnp
from jax.experimental import pallas as pl
from jax.experimental.pallas import tpu as pltpu

_LANES = 128
_MIN_BLOCKS = 4                    # >= 2 for v7x's two TensorCores; 4 gives headroom
_TARGET_BLOCK_BYTES = 8 << 20      # ~8 MiB per streamed (tb, 128) block
_VMEM_LIMIT_BYTES = 48 << 20       # safe on v5e/v6e (128 MiB phys) and v7x (64 MiB phys)


def _resnetfc_kernel(x_ref, wt_ref, b_ref, o_ref):
    """One (TB, D) packed batch tile: two fc1 applications + residual add.

    wt_ref holds the block-diagonal W1^T (D, D) so x @ wt == x @ W.T applied
    to each packed H-chunk independently. wt/b stay VMEM-resident across all
    grid steps (constant index_map); only x/out stream through VMEM.
    """
    x_in = x_ref[...]          # (TB, D) streamed per grid step (fp32 or bf16)
    wt = wt_ref[...]           # (D, D)  VMEM-resident
    b = b_ref[...]             # (1, D)  VMEM-resident fp32 bias, broadcasts over rows

    # x = fc1(relu(input)); fp32 accumulation on the MXU.
    x1 = jnp.dot(jnp.maximum(x_in, 0).astype(wt.dtype), wt,
                 preferred_element_type=jnp.float32) + b
    # y = fc1(relu(x))
    y = jnp.dot(jnp.maximum(x1, 0.0).astype(wt.dtype), wt,
                preferred_element_type=jnp.float32) + b

    o_ref[...] = (x1 + y).astype(o_ref.dtype)


def prepare_params(w1, b1, *, weight_dtype=jnp.float32):
    """One-time torch-layout -> kernel-layout conversion (init time, not hot path).

    Returns (W_blockdiag (D,D), bias (1,D) fp32, H, P) with D = P*H and
    P = 128 // H when H divides 128 (lane-dense packing), else P = 1.
    The block-diagonal packing is exact in fp32: extra terms are exact zeros.
    """
    w1 = jnp.asarray(w1, jnp.float32)
    b1 = jnp.asarray(b1, jnp.float32)
    H = w1.shape[0]
    P = _LANES // H if (H < _LANES and _LANES % H == 0) else 1
    D = P * H
    wt = w1.T                                   # x @ wt == x @ W.T (torch Linear)
    if P > 1:
        wd = jnp.zeros((D, D), jnp.float32)
        for i in range(P):
            wd = wd.at[i * H:(i + 1) * H, i * H:(i + 1) * H].set(wt)
    else:
        wd = wt
    bd = jnp.tile(b1, (P,)).reshape(1, D)       # bias kept fp32 (VPU-safe on v5e)
    return wd.astype(weight_dtype), bd, H, P


def _choose_tile(n_rows, row_bytes):
    """Sublane-aligned batch tile: big enough to amortize the ~0.35 us/step
    overhead and approach the HBM roofline, small enough for the VMEM budget,
    and never a single block for non-tiny batches (DMA overlap + 2-TC sharding)."""
    if n_rows < 16:                              # tiny batch: one full block
        return n_rows
    max_tb = max(8, (_TARGET_BLOCK_BYTES // row_bytes) // 8 * 8)
    tb_for_min_blocks = max(8, (n_rows // _MIN_BLOCKS) // 8 * 8)
    return min(max_tb, tb_for_min_blocks)


def resnet_fc_forward(x, params):
    """x: (B, H). params from prepare_params(). Returns (B, H) in x.dtype."""
    wd, bd, H, P = params
    B, Hx = x.shape
    assert Hx == H, f"hidden dim mismatch: {Hx} vs {H}"
    D = P * H

    # Pack H lanes up to 128: (B, H) -> (Bp, D). Pad B to a multiple of P if
    # needed (padded rows are computed then sliced away; per-row independent).
    pad = (-B) % P
    if pad:
        x = jnp.pad(x, ((0, pad), (0, 0)))
    xp = x.reshape((B + pad) // P, D)            # free row-major view
    Bp = xp.shape[0]

    tb = _choose_tile(Bp, D * x.dtype.itemsize)
    grid = (pl.cdiv(Bp, tb),)

    out_p = pl.pallas_call(
        _resnetfc_kernel,
        out_shape=jax.ShapeDtypeStruct((Bp, D), x.dtype),
        grid=grid,
        in_specs=[
            pl.BlockSpec((tb, D), lambda i: (i, 0)),   # activations: streamed
            pl.BlockSpec((D, D), lambda i: (0, 0)),    # weight: VMEM-resident
            pl.BlockSpec((1, D), lambda i: (0, 0)),    # bias:   VMEM-resident
        ],
        out_specs=pl.BlockSpec((tb, D), lambda i: (i, 0)),
        compiler_params=pltpu.CompilerParams(
            # Independent batch tiles -> shard across TensorCores on v7x.
            dimension_semantics=("parallel",),
            vmem_limit_bytes=_VMEM_LIMIT_BYTES),
    )(xp, wd, bd)

    out = out_p.reshape(Bp * P, H)
    return out[:B] if pad else out


def _torch_linear_init(key, out_features, in_features):
    """Deterministic replica of nn.Linear default init: U(-1/sqrt(fan_in), +)."""
    kw, kb = jax.random.split(key)
    bound = 1.0 / jnp.sqrt(jnp.float32(in_features))
    w = jax.random.uniform(kw, (out_features, in_features),
                           jnp.float32, -bound, bound)
    b = jax.random.uniform(kb, (out_features,), jnp.float32, -bound, bound)
    return w, b


if __name__ == "__main__":
    hidden_dim = 32
    batch = 64            # packs to (16, 128); tb=8 -> 2 grid steps

    root = jax.random.PRNGKey(0)
    k_x, k_fc1, k_fc2 = jax.random.split(root, 3)

    # Parameters (fc2 is initialized for shape fidelity but, as in the
    # reference forward pass, never used).
    w1, b1 = _torch_linear_init(k_fc1, hidden_dim, hidden_dim)
    w2, b2 = _torch_linear_init(k_fc2, hidden_dim, hidden_dim)  # unused, matches module

    x = jax.random.normal(k_x, (batch, hidden_dim), jnp.float32)

    # Layout conversion + lane packing done once, outside the hot path.
    params = prepare_params(w1, b1)

    out = resnet_fc_forward(x, params)
    out = jax.block_until_ready(out)

    # Pure-JAX reference for correctness.
    def ref(xx, w1, b1):
        x1 = jnp.maximum(xx, 0.0) @ w1.T + b1
        y = jnp.maximum(x1, 0.0) @ w1.T + b1
        return x1 + y

    expected = ref(x, w1, b1)
    assert out.shape == (batch, hidden_dim)
    assert jnp.allclose(out, expected, atol=1e-5, rtol=1e-5)

    # Also exercise the pad-and-pack path (batch not divisible by P).
    x_odd = jax.random.normal(jax.random.PRNGKey(1), (10, hidden_dim), jnp.float32)
    out_odd = jax.block_until_ready(resnet_fc_forward(x_odd, params))
    assert out_odd.shape == (10, hidden_dim)
    assert jnp.allclose(out_odd, ref(x_odd, w1, b1), atol=1e-5, rtol=1e-5)

    print("KERNEL_OK")
</pallas_src>

<mosaic_0001>
module attributes {stable_mosaic.version = 11 : i64} {
  func.func @_resnetfc_kernel(%arg0: i32, %arg1: memref<8x128xf32, #tpu.memory_space<vmem>>, %arg2: memref<128x128xf32, #tpu.memory_space<vmem>>, %arg3: memref<1x128xf32, #tpu.memory_space<vmem>>, %arg4: memref<8x128xf32, #tpu.memory_space<vmem>>) attributes {dimension_semantics = [#tpu.dimension_semantics<parallel>], iteration_bounds = array<i64: 2>, scalar_prefetch = 0 : i64, scratch_operands = 0 : i64, tpu.core_type = #tpu.core_type<tc>, window_params = [{transform_indices = @transform_0, window_bounds = array<i64: 8, 128>}, {pipeline_mode = #tpu.pipeline_mode<synchronous>, transform_indices = @transform_1, window_bounds = array<i64: 128, 128>}, {pipeline_mode = #tpu.pipeline_mode<synchronous>, transform_indices = @transform_2, window_bounds = array<i64: 1, 128>}, {transform_indices = @transform_3, window_bounds = array<i64: 8, 128>}]} {
    %c0 = arith.constant 0 : index
    %c0_0 = arith.constant 0 : index
    %0 = vector.load %arg1[%c0, %c0_0] : memref<8x128xf32, #tpu.memory_space<vmem>>, vector<8x128xf32>
    %c0_1 = arith.constant 0 : index
    %c0_2 = arith.constant 0 : index
    %1 = vector.load %arg2[%c0_1, %c0_2] : memref<128x128xf32, #tpu.memory_space<vmem>>, vector<128x128xf32>
    %c0_3 = arith.constant 0 : index
    %c0_4 = arith.constant 0 : index
    %2 = vector.load %arg3[%c0_3, %c0_4] : memref<1x128xf32, #tpu.memory_space<vmem>>, vector<1x128xf32>
    %cst = arith.constant 0.000000e+00 : f32
    %3 = vector.broadcast %cst : f32 to vector<8x128xf32>
    %4 = arith.maximumf %0, %3 : vector<8x128xf32>
    %cst_5 = arith.constant dense<0.000000e+00> : vector<8x128xf32>
    %5 = tpu.matmul %4, %1, %cst_5 {dimension_numbers = #tpu.dot_dimension_numbers<[1], [0], [0], [1], [0, 0, 1, 1], [], []>} : vector<8x128xf32>, vector<128x128xf32>, vector<8x128xf32> -> vector<8x128xf32>
    %6 = vector.broadcast %2 : vector<1x128xf32> to vector<8x128xf32>
    %7 = arith.addf %5, %6 : vector<8x128xf32>
    %cst_6 = arith.constant 0.000000e+00 : f32
    %8 = vector.broadcast %cst_6 : f32 to vector<8x128xf32>
    %9 = arith.maximumf %7, %8 : vector<8x128xf32>
    %cst_7 = arith.constant dense<0.000000e+00> : vector<8x128xf32>
    %10 = tpu.matmul %9, %1, %cst_7 {dimension_numbers = #tpu.dot_dimension_numbers<[1], [0], [0], [1], [0, 0, 1, 1], [], []>} : vector<8x128xf32>, vector<128x128xf32>, vector<8x128xf32> -> vector<8x128xf32>
    %11 = vector.broadcast %2 : vector<1x128xf32> to vector<8x128xf32>
    %12 = arith.addf %10, %11 : vector<8x128xf32>
    %13 = arith.addf %7, %12 : vector<8x128xf32>
    %c0_8 = arith.constant 0 : index
    %c0_9 = arith.constant 0 : index
    %14 = vector.load %arg4[%c0_8, %c0_9] : memref<8x128xf32, #tpu.memory_space<vmem>>, vector<8x128xf32>
    tpu.vector_store %arg4[%c0_8, %c0_9], %13 {strides = array<i32>} : memref<8x128xf32, #tpu.memory_space<vmem>>, vector<8x128xf32>,
    return
  }
  func.func @transform_0(%arg0: i32) -> (i32, i32) {
    %c0_i32 = arith.constant 0 : i32
    %c0_i32_0 = arith.constant 0 : i32
    return %arg0, %c0_i32 : i32, i32
  }
  func.func @transform_1(%arg0: i32) -> (i32, i32) {
    %c0_i32 = arith.constant 0 : i32
    %c0_i32_0 = arith.constant 0 : i32
    %c0_i32_1 = arith.constant 0 : i32
    return %c0_i32, %c0_i32_0 : i32, i32
  }
  func.func @transform_2(%arg0: i32) -> (i32, i32) {
    %c0_i32 = arith.constant 0 : i32
    %c0_i32_0 = arith.constant 0 : i32
    %c0_i32_1 = arith.constant 0 : i32
    return %c0_i32, %c0_i32_0 : i32, i32
  }
  func.func @transform_3(%arg0: i32) -> (i32, i32) {
    %c0_i32 = arith.constant 0 : i32
    %c0_i32_0 = arith.constant 0 : i32
    return %arg0, %c0_i32 : i32, i32
  }
}

</mosaic_0001>

<llo_original>
// kernel: tpu_custom_call.1
$region0: #{tpu_custom_call.1}
  #allocation0 [shape = 'u32[]', space=smem, size = 0x4, offset = 0x4, fixed_abs, tag = 'smem constant byte address 0x4 - core index']
  #allocation1 [shape = 'u32[72,128]{1,0:T(1,128)}', space=vmem, size = 0x9000, scoped, tag = 'internal scratch']
  %s0 = inlined_call_operand.hbm [shape: f32[16,128], index: 0, kind: input, shape index: {}]
  %s1 = inlined_call_operand.hbm [shape: f32[128,128], index: 1, kind: input, shape index: {}]
  %s2 = inlined_call_operand.vmem [shape: f32[1,128], index: 2, kind: input, shape index: {}]
  %s3 = inlined_call_operand.hbm [shape: f32[16,128], index: 3, kind: output, shape index: {}]
  %s4 = sld [smem:[#allocation0]]
  $region53: #{tpu_custom_call.1} parent=0
    _
  %s6 = ssub.s32 1, %s4
  %s7 = scalar_select 0, %s6, %s4
  $region1: #{tpu_custom_call.1} parent=0
    #allocation2 [shape = 'u8[8192]{0}', space=vmem, size = 0x2000, scoped, tag = 'input window, operand 0']
    #allocation3 [shape = 's32[2]{0}', space=sflag, size = 0x8, scoped, tag = 'scoped memory for tpu_custom_call.1']
    #allocation4 [shape = 's32[2]{0}', space=sflag, size = 0x8, scoped, tag = 'scoped memory for tpu_custom_call.1']
    #allocation5 [shape = 'u8[65536]{0}', space=vmem, size = 0x10000, scoped, tag = 'input window, operand 1, single buffered']
    #allocation6 [shape = 's32[1]{0}', space=sflag, size = 0x4, scoped, tag = 'scoped memory for tpu_custom_call.1']
    #allocation7 [shape = 'u8[8192]{0}', space=vmem, size = 0x2000, scoped, tag = 'output window, operand 0']
    %8 = vsyncpa [#allocation3], 0
    %s9 = scalar_lea.sflag [#allocation3], 1
    %10 = vsyncpa %s9, 0
    %11 = vsyncpa [#allocation6], 0
    %12 = vsyncpa [#allocation4], 0
    %s13 = scalar_lea.sflag [#allocation4], 1
    %14 = vsyncpa %s13, 0
    loop: start=0, step=1, limit=4
    $region2: #{tpu_custom_call.1} parent=1 // loop_pre_header
      _
    $region3: #{tpu_custom_call.1} parent=1 // loop_header
      %s16 = sphi 0, %s20
      %p17 = scmp.ge.s32.totalorder %s16, 4
      %s26 = sphi 0, %s28
      %s29 = sphi 0, %s26
      %s30 = sphi 0, %s29
      %s46 = sphi 0, %s30
      %s50 = sphi 0, %s50
      %s52 = sphi 0, %s50
      %s53 = sphi 0, %s52
      %s67 = sphi 0, %s53
      %s71 = sphi 0, %s71
      %s73 = sphi 0, %s71
      %s74 = sphi 0, %s73
      %s88 = sphi 0, %s74
      %s94 = sphi 0, %s96
      %s97 = sphi 0, %s94
      %s98 = sphi 0, %s97
      %s114 = sphi 0, %s98
    $region4: #{tpu_custom_call.1} parent=1 // loop_header_branch
      %19 = sbr.rel (%p17) target = $region8
    $region5: #{tpu_custom_call.1} parent=1 // loop_body
      %s21 = ssub.s32 %s16, 1
      %s22 = ssub.s32 %s16, 2
      %s23 = sadd.s32 %s16, 1
      %s24 = ssub.s32 %s16, %s23
      %p25 = scmp.eq.s32.totalorder %s24, 0
      %s27 = sadd.s32 %s26, 1
      %s28 = scalar_select %p25, %s26, %s27
      %p31 = pneg %p25
      %p32 = scmp.eq.s32.totalorder %s16, 1
      %p33 = por %p31, %p32
      %p34 = scmp.ne.s32.totalorder %s26, %s29
      %p35 = scmp.eq.s32.totalorder %s16, 0
      %p36 = por %p34, %p35
      %p37 = scmp.ne.s32.totalorder %s26, %s29
      %p38 = scmp.eq.s32.totalorder %s21, 1
      %p39 = por %p37, %p38
      %p40 = scmp.ne.s32.totalorder %s29, %s30
      %p41 = scmp.eq.s32.totalorder %s21, 0
      %p42 = por %p40, %p41
      %p43 = scmp.ne.s32.totalorder %s29, %s30
      %p44 = scmp.eq.s32.totalorder %s22, 1
      %p45 = por %p43, %p44
      %p47 = scmp.ne.s32.totalorder %s30, %s46
      %p48 = scmp.eq.s32.totalorder %s22, 0
      %p49 = por %p47, %p48
      %s51 = sadd.s32 %s50, 1
      %p54 = scmp.eq.s32.totalorder %s16, 1
      %p55 = scmp.ne.s32.totalorder %s50, %s52
      %p56 = scmp.eq.s32.totalorder %s16, 0
      %p57 = por %p55, %p56
      %p58 = scmp.ne.s32.totalorder %s50, %s52
      %p59 = scmp.eq.s32.totalorder %s21, 1
      %p60 = por %p58, %p59
      %p61 = scmp.ne.s32.totalorder %s52, %s53
      %p62 = scmp.eq.s32.totalorder %s21, 0
      %p63 = por %p61, %p62
      %p64 = scmp.ne.s32.totalorder %s52, %s53
      %p65 = scmp.eq.s32.totalorder %s22, 1
      %p66 = por %p64, %p65
      %p68 = scmp.ne.s32.totalorder %s53, %s67
      %p69 = scmp.eq.s32.totalorder %s22, 0
      %p70 = por %p68, %p69
      %s72 = sadd.s32 %s71, 1
      %p75 = scmp.eq.s32.totalorder %s16, 1
      %p76 = scmp.ne.s32.totalorder %s71, %s73
      %p77 = scmp.eq.s32.totalorder %s16, 0
      %p78 = por %p76, %p77
      %p79 = scmp.ne.s32.totalorder %s71, %s73
      %p80 = scmp.eq.s32.totalorder %s21, 1
      %p81 = por %p79, %p80
      %p82 = scmp.ne.s32.totalorder %s73, %s74
      %p83 = scmp.eq.s32.totalorder %s21, 0
      %p84 = por %p82, %p83
      %p85 = scmp.ne.s32.totalorder %s73, %s74
      %p86 = scmp.eq.s32.totalorder %s22, 1
      %p87 = por %p85, %p86
      %p89 = scmp.ne.s32.totalorder %s74, %s88
      %p90 = scmp.eq.s32.totalorder %s22, 0
      %p91 = por %p89, %p90
      %s92 = ssub.s32 %s16, %s23
      %p93 = scmp.eq.s32.totalorder %s92, 0
      %s95 = sadd.s32 %s94, 1
      %s96 = scalar_select %p93, %s94, %s95
      %p99 = pneg %p93
      %p100 = scmp.eq.s32.totalorder %s16, 1
      %p101 = por %p99, %p100
      %p102 = scmp.ne.s32.totalorder %s94, %s97
      %p103 = scmp.eq.s32.totalorder %s16, 0
      %p104 = por %p102, %p103
      %p105 = scmp.ne.s32.totalorder %s94, %s97
      %p106 = scmp.eq.s32.totalorder %s21, 1
      %p107 = por %p105, %p106
      %p108 = scmp.ne.s32.totalorder %s97, %s98
      %p109 = scmp.eq.s32.totalorder %s21, 0
      %p110 = por %p108, %p109
      %p111 = scmp.ne.s32.totalorder %s97, %s98
      %p112 = scmp.eq.s32.totalorder %s22, 1
      %p113 = por %p111, %p112
      %p115 = scmp.ne.s32.totalorder %s98, %s114
      %p116 = scmp.eq.s32.totalorder %s22, 0
      %p117 = por %p115, %p116
      %p118 = scmp.le.s32.totalorder 1, %s16
      %p119 = scmp.lt.s32.totalorder %s16, 3
      %p120 = pnand %p118, %p119
      %p121 = pneg %p120
      // Predicated region
      $region9: #{tpu_custom_call.1} parent=5 // pred_check
        _
      $region10: #{tpu_custom_call.1} parent=5 // pred_check_branch
        %123 = sbr.rel (%p120) target = $region12
      $region11: #{tpu_custom_call.1} parent=5 // pred_region
        %s124 = ssub.s32 %s16, 1
        // Predicated region
        $region13: #{tpu_custom_call.1} parent=11 // pred_check
          %p125 = pneg %p63
        $region14: #{tpu_custom_call.1} parent=11 // pred_check_branch
          %127 = sbr.rel (%p125) target = $region16
        $region15: #{tpu_custom_call.1} parent=11 // pred_region
          %129 = vsyncadd [#allocation6], 0
          %s130 = sshll.u32 %s1, 4
          %s131 = int_to_ptr.hbm [resolvable:$true] %s130
          %s132 = sshll.u32 [#allocation5], 4
          %s133 = int_to_ptr.vmem [resolvable:$true] %s132
          %138 = dma.hbm_to_vmem [thread:$0]  %s131, 2048, %s133, [#allocation6], 128, 128, 8
        $region16: #{tpu_custom_call.1} parent=11 // pred_fallthru
          _
        // Predicated region
        $region17: #{tpu_custom_call.1} parent=11 // pred_check
          %p139 = pneg %p84
        $region18: #{tpu_custom_call.1} parent=11 // pred_check_branch
          %141 = sbr.rel (%p139) target = $region20
        $region19: #{tpu_custom_call.1} parent=11 // pred_region
          _
        $region20: #{tpu_custom_call.1} parent=11 // pred_fallthru
          _
      $region12: #{tpu_custom_call.1} parent=5 // pred_fallthru
        _
      %p142 = scmp.lt.s32.totalorder %s16, 2
      // Predicated region
      $region21: #{tpu_custom_call.1} parent=5 // pred_check
        %p143 = pneg %p142
      $region22: #{tpu_custom_call.1} parent=5 // pred_check_branch
        %145 = sbr.rel (%p143) target = $region24
      $region23: #{tpu_custom_call.1} parent=5 // pred_region
        // Predicated region
        $region25: #{tpu_custom_call.1} parent=23 // pred_check
          %p146 = pneg %p36
        $region26: #{tpu_custom_call.1} parent=23 // pred_check_branch
          %148 = sbr.rel (%p146) target = $region28
        $region27: #{tpu_custom_call.1} parent=23 // pred_region
          %s149 = sand.u32 %s26, 1
          %s150 = scalar_lea.sflag [#allocation3], %s149
          %s151 = sand.u32 %s26, 1
          %s152 = smul.addr %s151, 8
          %s153 = scalar_lea.vmem [#allocation2], %s152
          %155 = vsyncadd %s150, 0
          %s156 = smul.addr %s16, 8
          %s157 = scalar_lea.hbm %s0, %s156
          %s159 = sshll.u32 %s157, 4
          %s160 = int_to_ptr.hbm [resolvable:$true] %s159
          %s161 = sshll.u32 %s153, 4
          %s162 = int_to_ptr.vmem [resolvable:$true] %s161
          %164 = dma.hbm_to_vmem [thread:$0]  %s160, 128, %s162, %s150
        $region28: #{tpu_custom_call.1} parent=23 // pred_fallthru
          _
      $region24: #{tpu_custom_call.1} parent=5 // pred_fallthru
        _
      %p165 = scmp.le.s32.totalorder 1, %s16
      %p166 = scmp.lt.s32.totalorder %s16, 3
      %p167 = pnand %p165, %p166
      %p168 = pneg %p167
      // Predicated region
      $region29: #{tpu_custom_call.1} parent=5 // pred_check
        _
      $region30: #{tpu_custom_call.1} parent=5 // pred_check_branch
        %170 = sbr.rel (%p167) target = $region32
      $region31: #{tpu_custom_call.1} parent=5 // pred_region
        %s171 = ssub.s32 %s16, 1
        %s172 = sand.u32 %s29, 1
        %s173 = scalar_lea.sflag [#allocation3], %s172
        %s174 = sand.u32 %s29, 1
        %s175 = smul.addr %s174, 8
        %s176 = scalar_lea.vmem [#allocation2], %s175
        // Predicated region
        $region33: #{tpu_custom_call.1} parent=31 // pred_check
          %p177 = pneg %p42
        $region34: #{tpu_custom_call.1} parent=31 // pred_check_branch
          %179 = sbr.rel (%p177) target = $region36
        $region35: #{tpu_custom_call.1} parent=31 // pred_region
          %181 = dma.done %s173, 128
        $region36: #{tpu_custom_call.1} parent=31 // pred_fallthru
          _
        // Predicated region
        $region37: #{tpu_custom_call.1} parent=31 // pred_check
          %p182 = pneg %p63
        $region38: #{tpu_custom_call.1} parent=31 // pred_check_branch
          %184 = sbr.rel (%p182) target = $region40
        $region39: #{tpu_custom_call.1} parent=31 // pred_region
          %186 = dma.done [#allocation6], 2048
        $region40: #{tpu_custom_call.1} parent=31 // pred_fallthru
          _
        %s187 = sand.u32 %s29, 1
        %s188 = scalar_lea.sflag [#allocation3], %s187
        %s189 = sand.u32 %s29, 1
        %s190 = smul.addr %s189, 8
        %s191 = scalar_lea.vmem [#allocation2], %s190
        %p192 = pneg %p42
        %p193 = pneg %p39
        %p194 = pneg %p63
        %p195 = pneg %p60
        %p196 = pneg %p84
        %p197 = pneg %p81
        %p198 = pneg %p110
        %p199 = pneg %p107
        %s200 = sand.u32 %s97, 1
        %s201 = scalar_lea.sflag [#allocation4], %s200
        %s202 = sand.u32 %s97, 1
        %s203 = smul.addr %s202, 8
        %s204 = scalar_lea.vmem [#allocation7], %s203
        %v205 = vld [vmem:[%s176] sm:$0xff]
        %v206 = vld [vmem:[#allocation5] sm:$0xff]
        %v207 = vld [vmem:[#allocation5 + $0x8] sm:$0xff]
        %v208 = vld [vmem:[#allocation5 + $0x10] sm:$0xff]
        %v209 = vld [vmem:[#allocation5 + $0x18] sm:$0xff]
        %v210 = vld [vmem:[#allocation5 + $0x20] sm:$0xff]
        %v211 = vld [vmem:[#allocation5 + $0x28] sm:$0xff]
        %v212 = vld [vmem:[#allocation5 + $0x30] sm:$0xff]
        %v213 = vld [vmem:[#allocation5 + $0x38] sm:$0xff]
        %v214 = vld [vmem:[#allocation5 + $0x40] sm:$0xff]
        %v215 = vld [vmem:[#allocation5 + $0x48] sm:$0xff]
        %v216 = vld [vmem:[#allocation5 + $0x50] sm:$0xff]
        %v217 = vld [vmem:[#allocation5 + $0x58] sm:$0xff]
        %v218 = vld [vmem:[#allocation5 + $0x60] sm:$0xff]
        %v219 = vld [vmem:[#allocation5 + $0x68] sm:$0xff]
        %v220 = vld [vmem:[#allocation5 + $0x70] sm:$0xff]
        %v221 = vld [vmem:[#allocation5 + $0x78] sm:$0xff]
        %v222 = vld [vmem:[%s2] sm:$0x1]
        %v223 = vmax.f32 %v205, 0.0
        %v225 = vperm.slane %v222, 0
        %227 = vmatpush.msra.mxu0 %v221
        %228 = vmatpush.msra.mxu0 %v220
        %229 = vmatpush.msra.mxu0 %v219
        %230 = vmatpush.msra.mxu0 %v218
        %231 = vmatpush.msra.mxu0 %v217
        %232 = vmatpush.msra.mxu0 %v216
        %233 = vmatpush.msra.mxu0 %v215
        %234 = vmatpush.msra.mxu0 %v214
        %235 = vmatpush.msra.mxu0 %v213
        %236 = vmatpush.msra.mxu0 %v212
        %237 = vmatpush.msra.mxu0 %v211
        %238 = vmatpush.msra.mxu0 %v210
        %239 = vmatpush.msra.mxu0 %v209
        %240 = vmatpush.msra.mxu0 %v208
        %241 = vmatpush.msra.mxu0 %v207
        %242 = vmatpush.msra.mxu0 %v206
        %243 = vmatmul.f32.gmra.mxu0 %v223
        %v244 = vpop.f32.mrf.mxu0
        %v245 = vadd.f32 %v225, %v244
        %246 = vdwg.mxu0
        %v247 = vmax.f32 %v245, 0.0
        %248 = vmatpush.msra.mxu0 %v221
        %249 = vmatpush.msra.mxu0 %v220
        %250 = vmatpush.msra.mxu0 %v219
        %251 = vmatpush.msra.mxu0 %v218
        %252 = vmatpush.msra.mxu0 %v217
        %253 = vmatpush.msra.mxu0 %v216
        %254 = vmatpush.msra.mxu0 %v215
        %255 = vmatpush.msra.mxu0 %v214
        %256 = vmatpush.msra.mxu0 %v213
        %257 = vmatpush.msra.mxu0 %v212
        %258 = vmatpush.msra.mxu0 %v211
        %259 = vmatpush.msra.mxu0 %v210
        %260 = vmatpush.msra.mxu0 %v209
        %261 = vmatpush.msra.mxu0 %v208
        %262 = vmatpush.msra.mxu0 %v207
        %263 = vmatpush.msra.mxu0 %v206
        %264 = vmatmul.f32.gmra.mxu0 %v247
        %v265 = vpop.f32.mrf.mxu0
        %v266 = vadd.f32 %v225, %v265
        %267 = vdwg.mxu0
        %v268 = vadd.f32 %v245, %v266
        %269 = vst [vmem:[%s204] sm:$0xff] %v268
        %s270 = sand.u32 %s97, 1
        %s271 = scalar_lea.sflag [#allocation4], %s270
        %s272 = sand.u32 %s97, 1
        %s273 = smul.addr %s272, 8
        %s274 = scalar_lea.vmem [#allocation7], %s273
        // Predicated region
        $region41: #{tpu_custom_call.1} parent=31 // pred_check
          %p275 = pneg %p107
        $region42: #{tpu_custom_call.1} parent=31 // pred_check_branch
          %277 = sbr.rel (%p275) target = $region44
        $region43: #{tpu_custom_call.1} parent=31 // pred_region
          %279 = vsyncadd %s271, 0
          %s280 = smul.addr %s21, 8
          %s281 = scalar_lea.hbm %s3, %s280
          %s283 = sshll.u32 %s274, 4
          %s284 = int_to_ptr.vmem [resolvable:$true] %s283
          %s285 = sshll.u32 %s281, 4
          %s286 = int_to_ptr.hbm [resolvable:$true] %s285
          %288 = dma.vmem_to_hbm [thread:$0]  %s284, 128, %s286, %s271
        $region44: #{tpu_custom_call.1} parent=31 // pred_fallthru
          _
      $region32: #{tpu_custom_call.1} parent=5 // pred_fallthru
        _
      %p289 = scmp.le.s32.totalorder 2, %s16
      // Predicated region
      $region45: #{tpu_custom_call.1} parent=5 // pred_check
        %p290 = pneg %p289
      $region46: #{tpu_custom_call.1} parent=5 // pred_check_branch
        %292 = sbr.rel (%p290) target = $region48
      $region47: #{tpu_custom_call.1} parent=5 // pred_region
        %s293 = ssub.s32 %s16, 2
        // Predicated region
        $region49: #{tpu_custom_call.1} parent=47 // pred_check
          %p294 = pneg %p113
        $region50: #{tpu_custom_call.1} parent=47 // pred_check_branch
          %296 = sbr.rel (%p294) target = $region52
        $region51: #{tpu_custom_call.1} parent=47 // pred_region
          %s297 = sand.u32 %s98, 1
          %s298 = scalar_lea.sflag [#allocation4], %s297
          %s299 = sand.u32 %s98, 1
          %s300 = smul.addr %s299, 8
          %s301 = scalar_lea.vmem [#allocation7], %s300
          %303 = dma.done %s298, 128
        $region52: #{tpu_custom_call.1} parent=47 // pred_fallthru
          _
      $region48: #{tpu_custom_call.1} parent=5 // pred_fallthru
        _
    $region6: #{tpu_custom_call.1} parent=1 // loop_footer
      %s20 = sadd.s32 1, %s16
    $region7: #{tpu_custom_call.1} parent=1 // loop_footer_branch
      %15 = sbr.rel target = $region3
    $region8: #{tpu_custom_call.1} parent=1 // loop_exit
      _
    %304 = vsyncpa [#allocation3], 1
    %s305 = scalar_lea.sflag [#allocation3], 1
    %306 = vsyncpa %s305, 1
    %307 = vsyncpa [#allocation6], 1
    %308 = vsyncpa [#allocation4], 1
    %s309 = scalar_lea.sflag [#allocation4], 1
    %310 = vsyncpa %s309, 1

</llo_original>
